<compile_context>
chip_gen: v6e
topology: v6e:2x2x1
jax: 0.10.0
libtpu: 0.0.40
codegen_flags: <defaults>
</compile_context>

<pallas_src>
import functools
import math

import jax
import jax.numpy as jnp
from jax.experimental import pallas as pl
from jax.experimental.pallas import tpu as pltpu


_LANE = 128
# Input-side bytes per block.  With double-buffered input + output the VMEM
# footprint is ~4x this, comfortably inside the 16 MiB default scoped VMEM on
# v5e and the 32 MiB defaults on v6e / v7x (64 MiB physical).
_BLOCK_BYTES_BUDGET = 2 * 1024 * 1024


def _taylor_softmax_kernel(x_ref, out_ref, *, n):
    """One (bb, C, T) tile: Taylor-exp polynomial + normalize over the C (sublane) axis."""
    x = x_ref[...].astype(jnp.float32)

    # fn = sum_{i=0}^{n} x^i / i!, Horner's rule (n is a static Python int).
    coeffs = [1.0 / math.factorial(i) for i in range(n, -1, -1)]  # highest power first
    if n == 0:
        fn = jnp.ones_like(x)
    else:
        fn = x * coeffs[0] + coeffs[1]
        for c in coeffs[2:]:
            fn = fn * x + c

    denom = jnp.sum(fn, axis=1, keepdims=True)     # (bb, 1, T): reduce over class axis
    inv = pl.reciprocal(denom, approx=True)        # EUP slot, off the VALU path
    out_ref[...] = (fn * inv).astype(out_ref.dtype)


def _round_down(v, m):
    return (v // m) * m


def _taylor_softmax_3d(x3, n):
    """Core: x3 is (B, C, S); Taylor softmax over axis 1."""
    b, c, s = x3.shape
    itemsize = jnp.dtype(x3.dtype).itemsize

    # How many lane elements fit in the per-block budget given a full C column.
    budget_elems = max(_LANE, _BLOCK_BYTES_BUDGET // max(1, c * itemsize))

    if s <= budget_elems or s <= _LANE:
        # Whole spatial extent per block; fold batch rows in to fill the budget,
        # but keep the grid at >= ~4 steps when batch allows (v7x has 2 TCs).
        t = s
        bb = max(1, budget_elems // max(1, s))
        bb = min(bb, max(1, (b + 3) // 4))
        bb = min(bb, b)
    else:
        # Tile the spatial axis; 128-aligned tiles keep output stores unmasked
        # (only the ragged last tile, if any, uses masked stores).
        t = max(_LANE, _round_down(budget_elems, _LANE))
        t = min(t, _round_down(s, _LANE))
        bb = 1

    grid = (pl.cdiv(b, bb), pl.cdiv(s, t))

    # Only raise the scoped-VMEM limit when the blocks actually need it.
    block_bytes = bb * c * t * itemsize
    vmem_needed = 4 * block_bytes + (1 << 20)      # 2x-buffered in + out, plus slack
    cp_kwargs = dict(dimension_semantics=("parallel", "parallel"))
    if vmem_needed > 16 * 1024 * 1024:
        cp_kwargs["vmem_limit_bytes"] = min(48 * 1024 * 1024, vmem_needed)
    compiler_params = pltpu.CompilerParams(**cp_kwargs)

    total = b * c * s
    cost = pl.CostEstimate(
        flops=(2 * n + 3) * total,
        transcendentals=0,
        bytes_accessed=2 * total * itemsize,
    )

    return pl.pallas_call(
        functools.partial(_taylor_softmax_kernel, n=n),
        out_shape=jax.ShapeDtypeStruct((b, c, s), x3.dtype),
        grid_spec=pltpu.PrefetchScalarGridSpec(
            num_scalar_prefetch=0,
            grid=grid,
            in_specs=[pl.BlockSpec((bb, c, t), lambda i, j: (i, 0, j))],
            out_specs=pl.BlockSpec((bb, c, t), lambda i, j: (i, 0, j)),
        ),
        compiler_params=compiler_params,
        cost_estimate=cost,
    )(x3)


def taylor_softmax(x, dim=1, n=2):
    """Pallas TPU implementation of TaylorSoftmax.forward."""
    assert n % 2 == 0
    if dim < 0:
        dim += x.ndim
    orig_dtype = x.dtype

    # Glue: move the softmax axis to position 1 and flatten trailing dims so the
    # kernel sees a lane-dense [B, C, S] layout.
    xm = jnp.moveaxis(x, dim, 1) if dim != 1 else x
    moved_shape = xm.shape
    b = moved_shape[0]
    c = moved_shape[1]
    s = 1
    for d in moved_shape[2:]:
        s *= d
    x3 = xm.reshape(b, c, s)

    if s < _LANE and b > 1:
        # Tiny / absent spatial extent (e.g. (B, C) classification logits):
        # put batch on the lane axis so stores stay lane-dense.
        xt = jnp.transpose(x3, (1, 0, 2)).reshape(1, c, b * s)
        ot = _taylor_softmax_3d(xt, n)
        out3 = jnp.transpose(ot.reshape(c, b, s), (1, 0, 2))
    else:
        out3 = _taylor_softmax_3d(x3, n)

    out = out3.reshape(moved_shape)
    if dim != 1:
        out = jnp.moveaxis(out, 1, dim)
    return out.astype(orig_dtype)


def _reference(x, dim=1, n=2):
    """Pure-JAX mirror of the PyTorch forward."""
    xf = x.astype(jnp.float32)
    fn = jnp.ones_like(xf)
    denor = 1.0
    for i in range(1, n + 1):
        denor *= i
        fn = fn + jnp.power(xf, i) / denor
    return fn / jnp.sum(fn, axis=dim, keepdims=True)


if __name__ == "__main__":
    key = jax.random.PRNGKey(0)
    k1, k2 = jax.random.split(key)

    # 4-D "image" case: softmax over the channel axis.
    x = jax.random.normal(k1, (2, 4, 16, 16), dtype=jnp.float32)
    out = jax.block_until_ready(taylor_softmax(x, dim=1, n=2))
    ref = _reference(x, dim=1, n=2)
    assert out.shape == x.shape, (out.shape, x.shape)
    assert jnp.allclose(out, ref.astype(out.dtype), atol=2e-3, rtol=2e-3), (
        jnp.max(jnp.abs(out - ref)))

    # 2-D classification-logits case (exercises the lane-dense tiny-S remap).
    logits = jax.random.normal(k2, (8, 10), dtype=jnp.float32)
    out2 = jax.block_until_ready(taylor_softmax(logits, dim=1, n=2))
    ref2 = _reference(logits, dim=1, n=2)
    assert out2.shape == logits.shape
    assert jnp.allclose(out2, ref2.astype(out2.dtype), atol=2e-3, rtol=2e-3), (
        jnp.max(jnp.abs(out2 - ref2)))

    print("KERNEL_OK")
</pallas_src>

<mosaic_0001>
module attributes {stable_mosaic.version = 11 : i64} {
  func.func @_taylor_softmax_kernel(%arg0: i32, %arg1: i32, %arg2: memref<1x4x256xf32, #tpu.memory_space<vmem>>, %arg3: memref<1x4x256xf32, #tpu.memory_space<vmem>>) attributes {dimension_semantics = [#tpu.dimension_semantics<parallel>, #tpu.dimension_semantics<parallel>], iteration_bounds = array<i64: 2, 1>, scalar_prefetch = 0 : i64, scratch_operands = 0 : i64, tpu.core_type = #tpu.core_type<tc>, window_params = [{transform_indices = @transform_0, window_bounds = array<i64: 1, 4, 256>}, {transform_indices = @transform_1, window_bounds = array<i64: 1, 4, 256>}]} {
    %c0 = arith.constant 0 : index
    %c0_0 = arith.constant 0 : index
    %c0_1 = arith.constant 0 : index
    %0 = vector.load %arg2[%c0, %c0_0, %c0_1] : memref<1x4x256xf32, #tpu.memory_space<vmem>>, vector<1x4x256xf32>
    %cst = arith.constant 5.000000e-01 : f32
    %1 = vector.broadcast %cst : f32 to vector<1x4x256xf32>
    %2 = arith.mulf %0, %1 : vector<1x4x256xf32>
    %cst_2 = arith.constant 1.000000e+00 : f32
    %3 = vector.broadcast %cst_2 : f32 to vector<1x4x256xf32>
    %4 = arith.addf %2, %3 : vector<1x4x256xf32>
    %5 = arith.mulf %4, %0 : vector<1x4x256xf32>
    %cst_3 = arith.constant 1.000000e+00 : f32
    %6 = vector.broadcast %cst_3 : f32 to vector<1x4x256xf32>
    %7 = arith.addf %5, %6 : vector<1x4x256xf32>
    %cst_4 = arith.constant dense<0.000000e+00> : vector<1x256xf32>
    %8 = vector.multi_reduction <add>, %7, %cst_4 [1] : vector<1x4x256xf32> to vector<1x256xf32>
    %9 = vector.shape_cast %8 : vector<1x256xf32> to vector<1x1x256xf32>
    %10 = tpu.reciprocal %9 {approx = true} : vector<1x1x256xf32> -> vector<1x1x256xf32>
    %11 = vector.broadcast %10 : vector<1x1x256xf32> to vector<1x4x256xf32>
    %12 = arith.mulf %7, %11 : vector<1x4x256xf32>
    %c0_5 = arith.constant 0 : index
    %c0_6 = arith.constant 0 : index
    %c0_7 = arith.constant 0 : index
    %13 = vector.load %arg3[%c0_5, %c0_6, %c0_7] : memref<1x4x256xf32, #tpu.memory_space<vmem>>, vector<1x4x256xf32>
    tpu.vector_store %arg3[%c0_5, %c0_6, %c0_7], %12 {strides = array<i32>} : memref<1x4x256xf32, #tpu.memory_space<vmem>>, vector<1x4x256xf32>,
    return
  }
  func.func @transform_0(%arg0: i32, %arg1: i32) -> (i32, i32, i32) {
    %c0_i32 = arith.constant 0 : i32
    %c0_i32_0 = arith.constant 0 : i32
    return %arg0, %c0_i32, %arg1 : i32, i32, i32
  }
  func.func @transform_1(%arg0: i32, %arg1: i32) -> (i32, i32, i32) {
    %c0_i32 = arith.constant 0 : i32
    %c0_i32_0 = arith.constant 0 : i32
    return %arg0, %c0_i32, %arg1 : i32, i32, i32
  }
}

</mosaic_0001>

<llo_original>
// kernel: tpu_custom_call.1
$region0: #{tpu_custom_call.1}
  #allocation0 [shape = 'u32[]', space=smem, size = 0x4, offset = 0x4, fixed_abs, tag = 'smem constant byte address 0x4 - core index']
  #allocation1 [shape = 'u32[144,128]{1,0:T(1,128)}', space=vmem, size = 0x12000, scoped, tag = 'internal scratch']
  %s0 = inlined_call_operand.hbm [shape: f32[2,4,256], index: 0, kind: input, shape index: {}]
  %s1 = inlined_call_operand.hbm [shape: f32[2,4,256], index: 1, kind: output, shape index: {}]
  %s2 = sld [smem:[#allocation0]]
  $region41: #{tpu_custom_call.1} parent=0
    _
  %s4 = ssub.s32 1, %s2
  %s5 = scalar_select 0, %s4, %s2
  $region1: #{tpu_custom_call.1} parent=0
    #allocation2 [shape = 'u8[8192]{0}', space=vmem, size = 0x2000, scoped, tag = 'input window, operand 0']
    #allocation3 [shape = 's32[2]{0}', space=sflag, size = 0x8, scoped, tag = 'scoped memory for tpu_custom_call.1']
    #allocation4 [shape = 's32[2]{0}', space=sflag, size = 0x8, scoped, tag = 'scoped memory for tpu_custom_call.1']
    #allocation5 [shape = 'u8[8192]{0}', space=vmem, size = 0x2000, scoped, tag = 'output window, operand 0']
    %6 = vsyncpa [#allocation3], 0
    %s7 = scalar_lea.sflag [#allocation3], 1
    %8 = vsyncpa %s7, 0
    %9 = vsyncpa [#allocation4], 0
    %s10 = scalar_lea.sflag [#allocation4], 1
    %11 = vsyncpa %s10, 0
    loop: start=0, step=1, limit=4
    $region2: #{tpu_custom_call.1} parent=1 // loop_pre_header
      _
    $region3: #{tpu_custom_call.1} parent=1 // loop_header
      %s13 = sphi 0, %s17
      %p14 = scmp.ge.s32.totalorder %s13, 4
      %s20 = sphi 0, %s32
      %s21 = sphi 0, %s28
      %s22 = sphi 0, %s20
      %s23 = sphi 0, %s21
      %s24 = sphi 0, %s22
      %s25 = sphi 0, %s23
      %s37 = sphi 0, %s39
      %s40 = sphi 0, %s37
      %s41 = sphi 0, %s40
      %s57 = sphi 0, %s41
      %s65 = sphi 0, %s67
      %s68 = sphi 0, %s65
      %s69 = sphi 0, %s68
      %s85 = sphi 0, %s69
    $region4: #{tpu_custom_call.1} parent=1 // loop_header_branch
      %16 = sbr.rel (%p14) target = $region8
    $region5: #{tpu_custom_call.1} parent=1 // loop_body
      %s18 = ssub.s32 %s13, 1
      %s19 = ssub.s32 %s13, 2
      %s26 = sadd.s32 1, %s21
      %p27 = scmp.ge.s32.totalorder %s26, 1
      %s28 = scalar_select %p27, 0, %s26
      %s29 = sadd.s32 1, %s20
      %s30 = scalar_select %p27, %s29, %s20
      %p31 = scmp.ge.s32.totalorder %s30, 2
      %s32 = scalar_select %p31, 0, %s30
      %s33 = ssub.s32 %s20, %s32
      %s34 = ssub.s32 %s21, %s28
      %s35 = sor.u32 %s33, %s34
      %p36 = scmp.eq.s32.totalorder %s35, 0
      %s38 = sadd.s32 %s37, 1
      %s39 = scalar_select %p36, %s37, %s38
      %p42 = pneg %p36
      %p43 = scmp.eq.s32.totalorder %s13, 1
      %p44 = por %p42, %p43
      %p45 = scmp.ne.s32.totalorder %s37, %s40
      %p46 = scmp.eq.s32.totalorder %s13, 0
      %p47 = por %p45, %p46
      %p48 = scmp.ne.s32.totalorder %s37, %s40
      %p49 = scmp.eq.s32.totalorder %s18, 1
      %p50 = por %p48, %p49
      %p51 = scmp.ne.s32.totalorder %s40, %s41
      %p52 = scmp.eq.s32.totalorder %s18, 0
      %p53 = por %p51, %p52
      %p54 = scmp.ne.s32.totalorder %s40, %s41
      %p55 = scmp.eq.s32.totalorder %s19, 1
      %p56 = por %p54, %p55
      %p58 = scmp.ne.s32.totalorder %s41, %s57
      %p59 = scmp.eq.s32.totalorder %s19, 0
      %p60 = por %p58, %p59
      %s61 = ssub.s32 %s20, %s32
      %s62 = ssub.s32 %s21, %s28
      %s63 = sor.u32 %s61, %s62
      %p64 = scmp.eq.s32.totalorder %s63, 0
      %s66 = sadd.s32 %s65, 1
      %s67 = scalar_select %p64, %s65, %s66
      %p70 = pneg %p64
      %p71 = scmp.eq.s32.totalorder %s13, 1
      %p72 = por %p70, %p71
      %p73 = scmp.ne.s32.totalorder %s65, %s68
      %p74 = scmp.eq.s32.totalorder %s13, 0
      %p75 = por %p73, %p74
      %p76 = scmp.ne.s32.totalorder %s65, %s68
      %p77 = scmp.eq.s32.totalorder %s18, 1
      %p78 = por %p76, %p77
      %p79 = scmp.ne.s32.totalorder %s68, %s69
      %p80 = scmp.eq.s32.totalorder %s18, 0
      %p81 = por %p79, %p80
      %p82 = scmp.ne.s32.totalorder %s68, %s69
      %p83 = scmp.eq.s32.totalorder %s19, 1
      %p84 = por %p82, %p83
      %p86 = scmp.ne.s32.totalorder %s69, %s85
      %p87 = scmp.eq.s32.totalorder %s19, 0
      %p88 = por %p86, %p87
      %p89 = scmp.le.s32.totalorder 1, %s13
      %p90 = scmp.lt.s32.totalorder %s13, 3
      %p91 = pnand %p89, %p90
      %p92 = pneg %p91
      // Predicated region
      $region9: #{tpu_custom_call.1} parent=5 // pred_check
        _
      $region10: #{tpu_custom_call.1} parent=5 // pred_check_branch
        %94 = sbr.rel (%p91) target = $region12
      $region11: #{tpu_custom_call.1} parent=5 // pred_region
        %s95 = ssub.s32 %s13, 1
      $region12: #{tpu_custom_call.1} parent=5 // pred_fallthru
        _
      %p96 = scmp.lt.s32.totalorder %s13, 2
      // Predicated region
      $region13: #{tpu_custom_call.1} parent=5 // pred_check
        %p97 = pneg %p96
      $region14: #{tpu_custom_call.1} parent=5 // pred_check_branch
        %99 = sbr.rel (%p97) target = $region16
      $region15: #{tpu_custom_call.1} parent=5 // pred_region
        // Predicated region
        $region17: #{tpu_custom_call.1} parent=15 // pred_check
          %p100 = pneg %p47
        $region18: #{tpu_custom_call.1} parent=15 // pred_check_branch
          %102 = sbr.rel (%p100) target = $region20
        $region19: #{tpu_custom_call.1} parent=15 // pred_region
          %s103 = sand.u32 %s37, 1
          %s104 = scalar_lea.sflag [#allocation3], %s103
          %s105 = sand.u32 %s37, 1
          %s106 = smul.addr %s105, 8
          %s107 = scalar_lea.vmem [#allocation2], %s106
          %s108 = smul.u32 2, %s21
          %s110 = ssub.s32 128, 128
          %111 = vsyncadd %s104, %s110
          %s112 = smul.addr %s20, 2
          %s113 = sadd.s32 %s108, %s112
          %s114 = smul.addr %s113, 64
          %s115 = scalar_lea.hbm %s0, %s114
          %s117 = sshll.u32 %s107, 4
          %s118 = int_to_ptr.vmem [resolvable:$true] %s117
          %120 = dma.hbm_to_vmem [thread:$0]  %s115, 128, %s118, %s104
        $region20: #{tpu_custom_call.1} parent=15 // pred_fallthru
          _
      $region16: #{tpu_custom_call.1} parent=5 // pred_fallthru
        _
      %p121 = scmp.le.s32.totalorder 1, %s13
      %p122 = scmp.lt.s32.totalorder %s13, 3
      %p123 = pnand %p121, %p122
      %p124 = pneg %p123
      // Predicated region
      $region21: #{tpu_custom_call.1} parent=5 // pred_check
        _
      $region22: #{tpu_custom_call.1} parent=5 // pred_check_branch
        %126 = sbr.rel (%p123) target = $region24
      $region23: #{tpu_custom_call.1} parent=5 // pred_region
        %s127 = ssub.s32 %s13, 1
        %s128 = sand.u32 %s40, 1
        %s129 = scalar_lea.sflag [#allocation3], %s128
        %s130 = sand.u32 %s40, 1
        %s131 = smul.addr %s130, 8
        %s132 = scalar_lea.vmem [#allocation2], %s131
        // Predicated region
        $region25: #{tpu_custom_call.1} parent=23 // pred_check
          %p133 = pneg %p53
        $region26: #{tpu_custom_call.1} parent=23 // pred_check_branch
          %135 = sbr.rel (%p133) target = $region28
        $region27: #{tpu_custom_call.1} parent=23 // pred_region
          %136 = dma.done %s129, 128
        $region28: #{tpu_custom_call.1} parent=23 // pred_fallthru
          _
        %s137 = sand.u32 %s40, 1
        %s138 = scalar_lea.sflag [#allocation3], %s137
        %s139 = sand.u32 %s40, 1
        %s140 = smul.addr %s139, 8
        %s141 = scalar_lea.vmem [#allocation2], %s140
        %p142 = pneg %p53
        %p143 = pneg %p50
        %p144 = pneg %p81
        %p145 = pneg %p78
        %s146 = sand.u32 %s68, 1
        %s147 = scalar_lea.sflag [#allocation4], %s146
        %s148 = sand.u32 %s68, 1
        %s149 = smul.addr %s148, 8
        %s150 = scalar_lea.vmem [#allocation5], %s149
        %s151 = smul.u32 2, %s23
        %s152 = smul.u32 2, %s23
        %v153 = vld [vmem:[%s132] sm:$0xff]
        %v154 = vmul.f32 %v153, 0.5
        %v155 = vadd.f32 %v154, 1.0
        %v156 = vmul.f32 %v155, %v153
        %v157 = vadd.f32 %v156, 1.0
        %v159 = vcombine.high %v157, %v157
        %vm161 = vcmask 1043456
        %v162 = vsel %vm161, %v157, 0.0
        %v163 = vrot.slane %v162, 4
        %v164 = vadd.f32 %v162, %v163
        %v165 = vrot.slane %v164, 2
        %v166 = vadd.f32 %v164, %v165
        %v167 = vrot.slane %v166, 1
        %v168 = vadd.f32 %v166, %v167
        %v169 = vsel %vm161, %v159, 0.0
        %v170 = vrot.slane %v169, 4
        %v171 = vadd.f32 %v169, %v170
        %v172 = vrot.slane %v171, 2
        %v173 = vadd.f32 %v171, %v172
        %v174 = vrot.slane %v173, 1
        %v175 = vadd.f32 %v173, %v174
        %v176 = vrcp.pop %v168
        %v177 = vrcp.pop %v175
        %v180 = vcombine.low %v176, %v177
        %v182 = vmul.f32 %v157, %v180
        %183 = vst [vmem:[%s150] sm:$0xff] %v182
        %s184 = sand.u32 %s68, 1
        %s185 = scalar_lea.sflag [#allocation4], %s184
        %s186 = sand.u32 %s68, 1
        %s187 = smul.addr %s186, 8
        %s188 = scalar_lea.vmem [#allocation5], %s187
        // Predicated region
        $region29: #{tpu_custom_call.1} parent=23 // pred_check
          %p189 = pneg %p78
        $region30: #{tpu_custom_call.1} parent=23 // pred_check_branch
          %191 = sbr.rel (%p189) target = $region32
        $region31: #{tpu_custom_call.1} parent=23 // pred_region
          %s192 = smul.u32 2, %s23
          %s194 = ssub.s32 128, 128
          %195 = vsyncadd %s185, %s194
          %s196 = smul.addr %s22, 2
          %s197 = sadd.s32 %s192, %s196
          %s198 = smul.addr %s197, 64
          %s199 = scalar_lea.hbm %s1, %s198
          %s201 = sshll.u32 %s188, 4
          %s202 = int_to_ptr.vmem [resolvable:$true] %s201
          %204 = dma.vmem_to_hbm [thread:$0]  %s202, 128, %s199, %s185
        $region32: #{tpu_custom_call.1} parent=23 // pred_fallthru
          _
      $region24: #{tpu_custom_call.1} parent=5 // pred_fallthru
        _
      %p205 = scmp.le.s32.totalorder 2, %s13
      // Predicated region
      $region33: #{tpu_custom_call.1} parent=5 // pred_check
        %p206 = pneg %p205
      $region34: #{tpu_custom_call.1} parent=5 // pred_check_branch
        %208 = sbr.rel (%p206) target = $region36
      $region35: #{tpu_custom_call.1} parent=5 // pred_region
        %s209 = ssub.s32 %s13, 2
        // Predicated region
        $region37: #{tpu_custom_call.1} parent=35 // pred_check
          %p210 = pneg %p84
        $region38: #{tpu_custom_call.1} parent=35 // pred_check_branch
          %212 = sbr.rel (%p210) target = $region40
        $region39: #{tpu_custom_call.1} parent=35 // pred_region
          %s213 = sand.u32 %s69, 1
          %s214 = scalar_lea.sflag [#allocation4], %s213
          %s215 = sand.u32 %s69, 1
          %s216 = smul.addr %s215, 8
          %s217 = scalar_lea.vmem [#allocation5], %s216
          %218 = dma.done %s214, 128
        $region40: #{tpu_custom_call.1} parent=35 // pred_fallthru
          _
      $region36: #{tpu_custom_call.1} parent=5 // pred_fallthru
        _
    $region6: #{tpu_custom_call.1} parent=1 // loop_footer
      %s17 = sadd.s32 1, %s13
    $region7: #{tpu_custom_call.1} parent=1 // loop_footer_branch
      %12 = sbr.rel target = $region3
    $region8: #{tpu_custom_call.1} parent=1 // loop_exit
      _
    %219 = vsyncpa [#allocation3], 1
    %s220 = scalar_lea.sflag [#allocation3], 1
    %221 = vsyncpa %s220, 1
    %222 = vsyncpa [#allocation4], 1
    %s223 = scalar_lea.sflag [#allocation4], 1
    %224 = vsyncpa %s223, 1

</llo_original>
